<compile_context>
chip_gen: v6e
topology: v6e:2x2x1
jax: 0.10.0
libtpu: 0.0.40
codegen_flags: <defaults>
</compile_context>

<pallas_src>
import jax
import jax.numpy as jnp
from jax.experimental import pallas as pl
from jax.experimental.pallas import tpu as pltpu


def _reshape_kernel(x_ref, o_ref):
    # x_ref: (BB, 32, 128) VMEM block — first 128 columns of x3 for BB batches.
    # o_ref: (BB, 4, 32, 8) VMEM block — o_ref[b, i, r, k] = x3[b, r, 40*i + k].
    for i in range(4):  # static unrolled loop -> static lane slices only
        o_ref[:, i, :, :] = x_ref[:, :, 40 * i:40 * i + 8]


def reshape_forward(x, *, batch_block=64):
    """Equivalent (fixed-up) forward of the PyTorch `Reshape` module."""
    B = x.shape[0]
    nelem = 1
    for d in x.shape[1:]:
        nelem *= d
    assert nelem % 32 == 0, "trailing dims must reshape to (32, L)"
    L = nelem // 32
    assert L >= 128, "need at least four 32-wide chunks after the reshape"

    # Only the first 128 columns of x3 are ever read.  Slicing here lets XLA
    # fuse reshape+slice and materialize just (B, 32, 128) as the kernel
    # operand instead of relayouting all L columns of x3 to HBM.
    x3_128 = jnp.reshape(x, (B, 32, L))[:, :, :128]

    BB = min(batch_block, B)
    if B > 1:
        # Keep >= 2 grid steps so both v7x TensorCores share the parallel
        # batch axis (no-op whenever B >= 2 * batch_block).
        BB = min(BB, pl.cdiv(B, 2))
    grid = (pl.cdiv(B, BB),)

    itemsize = jnp.dtype(x.dtype).itemsize
    cost = pl.CostEstimate(
        flops=0,
        transcendentals=0,
        # input block reads + lane-padded (8 -> 128) output writes
        bytes_accessed=B * 32 * 128 * itemsize + B * 4 * 32 * 128 * itemsize,
    )

    out = pl.pallas_call(
        _reshape_kernel,
        out_shape=jax.ShapeDtypeStruct((B, 4, 32, 8), x.dtype),
        grid=grid,
        in_specs=[pl.BlockSpec((BB, 32, 128), lambda g: (g, 0, 0))],
        out_specs=pl.BlockSpec((BB, 4, 32, 8), lambda g: (g, 0, 0, 0)),
        compiler_params=pltpu.CompilerParams(
            dimension_semantics=("parallel",)),
        cost_estimate=cost,
    )(x3_128)

    # Collapsing the leading (B, 4) dims is a pure metadata reshape (the last
    # two tiled dims are unchanged): out[b, i, r, k] -> y[4*b + i, r, k].
    return out.reshape(B * 4, 32, 8)


def _reference(x):
    """Pure-JAX reference following the (fixed) module semantics."""
    B = x.shape[0]
    x3 = jnp.reshape(x, (B, 32, -1))
    ys = []
    for i in range(4):
        x_i = x3[:, :, 32 * i:32 * (i + 1)]        # (B, 32, 32)
        x_i = x_i.reshape(B, 32, 4, -1)            # (B, 32, 4, 8)
        x_i = jnp.transpose(x_i, (0, 2, 1, 3))     # (B, 4, 32, 8)
        y_i = x_i[:, i, :, :]                      # (B, 32, 8)
        ys.append(y_i.reshape(B, 32, -1))
    y = jnp.concatenate(ys, axis=1)                # (B, 128, 8)
    return y.reshape(B * 4, 32, -1)                # (4B, 32, 8)


if __name__ == "__main__":
    key = jax.random.PRNGKey(0)
    # (dim_0, dim_1, dim_2) = (2, 4, 1024)  ->  x3 is (2, 32, 128)
    x = jax.random.normal(key, (2, 4, 1024), dtype=jnp.float32)

    out = reshape_forward(x)
    jax.block_until_ready(out)

    ref = _reference(x)
    assert out.shape == (8, 32, 8), out.shape
    assert jnp.allclose(out, ref), "Pallas kernel mismatch vs reference"

    print("KERNEL_OK")
</pallas_src>

<mosaic_0001>
module attributes {stable_mosaic.version = 11 : i64} {
  func.func @_reshape_kernel(%arg0: i32, %arg1: memref<1x32x128xf32, #tpu.memory_space<vmem>>, %arg2: memref<1x4x32x8xf32, #tpu.memory_space<vmem>>) attributes {dimension_semantics = [#tpu.dimension_semantics<parallel>], iteration_bounds = array<i64: 2>, scalar_prefetch = 0 : i64, scratch_operands = 0 : i64, tpu.core_type = #tpu.core_type<tc>, window_params = [{transform_indices = @transform_0, window_bounds = array<i64: 1, 32, 128>}, {transform_indices = @transform_1, window_bounds = array<i64: 1, 4, 32, 8>}]} {
    %c0 = arith.constant 0 : index
    %c0_0 = arith.constant 0 : index
    %c0_1 = arith.constant 0 : index
    %0 = vector.load %arg1[%c0, %c0_0, %c0_1] : memref<1x32x128xf32, #tpu.memory_space<vmem>>, vector<1x32x8xf32>
    %c0_2 = arith.constant 0 : index
    %c0_3 = arith.constant 0 : index
    %c0_4 = arith.constant 0 : index
    %c0_5 = arith.constant 0 : index
    %1 = vector.load %arg2[%c0_2, %c0_3, %c0_4, %c0_5] : memref<1x4x32x8xf32, #tpu.memory_space<vmem>>, vector<1x1x32x8xf32>
    %2 = vector.shape_cast %1 : vector<1x1x32x8xf32> to vector<1x32x8xf32>
    %3 = vector.shape_cast %0 : vector<1x32x8xf32> to vector<1x1x32x8xf32>
    tpu.vector_store %arg2[%c0_2, %c0_3, %c0_4, %c0_5], %3 {strides = array<i32>} : memref<1x4x32x8xf32, #tpu.memory_space<vmem>>, vector<1x1x32x8xf32>,
    %c0_6 = arith.constant 0 : index
    %c0_7 = arith.constant 0 : index
    %c40 = arith.constant 40 : index
    %4 = vector.load %arg1[%c0_6, %c0_7, %c40] : memref<1x32x128xf32, #tpu.memory_space<vmem>>, vector<1x32x8xf32>
    %c0_8 = arith.constant 0 : index
    %c1 = arith.constant 1 : index
    %c0_9 = arith.constant 0 : index
    %c0_10 = arith.constant 0 : index
    %5 = vector.load %arg2[%c0_8, %c1, %c0_9, %c0_10] : memref<1x4x32x8xf32, #tpu.memory_space<vmem>>, vector<1x1x32x8xf32>
    %6 = vector.shape_cast %5 : vector<1x1x32x8xf32> to vector<1x32x8xf32>
    %7 = vector.shape_cast %4 : vector<1x32x8xf32> to vector<1x1x32x8xf32>
    tpu.vector_store %arg2[%c0_8, %c1, %c0_9, %c0_10], %7 {strides = array<i32>} : memref<1x4x32x8xf32, #tpu.memory_space<vmem>>, vector<1x1x32x8xf32>,
    %c0_11 = arith.constant 0 : index
    %c0_12 = arith.constant 0 : index
    %c80 = arith.constant 80 : index
    %8 = vector.load %arg1[%c0_11, %c0_12, %c80] : memref<1x32x128xf32, #tpu.memory_space<vmem>>, vector<1x32x8xf32>
    %c0_13 = arith.constant 0 : index
    %c2 = arith.constant 2 : index
    %c0_14 = arith.constant 0 : index
    %c0_15 = arith.constant 0 : index
    %9 = vector.load %arg2[%c0_13, %c2, %c0_14, %c0_15] : memref<1x4x32x8xf32, #tpu.memory_space<vmem>>, vector<1x1x32x8xf32>
    %10 = vector.shape_cast %9 : vector<1x1x32x8xf32> to vector<1x32x8xf32>
    %11 = vector.shape_cast %8 : vector<1x32x8xf32> to vector<1x1x32x8xf32>
    tpu.vector_store %arg2[%c0_13, %c2, %c0_14, %c0_15], %11 {strides = array<i32>} : memref<1x4x32x8xf32, #tpu.memory_space<vmem>>, vector<1x1x32x8xf32>,
    %c0_16 = arith.constant 0 : index
    %c0_17 = arith.constant 0 : index
    %c120 = arith.constant 120 : index
    %12 = vector.load %arg1[%c0_16, %c0_17, %c120] : memref<1x32x128xf32, #tpu.memory_space<vmem>>, vector<1x32x8xf32>
    %c0_18 = arith.constant 0 : index
    %c3 = arith.constant 3 : index
    %c0_19 = arith.constant 0 : index
    %c0_20 = arith.constant 0 : index
    %13 = vector.load %arg2[%c0_18, %c3, %c0_19, %c0_20] : memref<1x4x32x8xf32, #tpu.memory_space<vmem>>, vector<1x1x32x8xf32>
    %14 = vector.shape_cast %13 : vector<1x1x32x8xf32> to vector<1x32x8xf32>
    %15 = vector.shape_cast %12 : vector<1x32x8xf32> to vector<1x1x32x8xf32>
    tpu.vector_store %arg2[%c0_18, %c3, %c0_19, %c0_20], %15 {strides = array<i32>} : memref<1x4x32x8xf32, #tpu.memory_space<vmem>>, vector<1x1x32x8xf32>,
    return
  }
  func.func @transform_0(%arg0: i32) -> (i32, i32, i32) {
    %c0_i32 = arith.constant 0 : i32
    %c0_i32_0 = arith.constant 0 : i32
    %c0_i32_1 = arith.constant 0 : i32
    return %arg0, %c0_i32, %c0_i32_0 : i32, i32, i32
  }
  func.func @transform_1(%arg0: i32) -> (i32, i32, i32, i32) {
    %c0_i32 = arith.constant 0 : i32
    %c0_i32_0 = arith.constant 0 : i32
    %c0_i32_1 = arith.constant 0 : i32
    %c0_i32_2 = arith.constant 0 : i32
    return %arg0, %c0_i32, %c0_i32_0, %c0_i32_1 : i32, i32, i32, i32
  }
}

</mosaic_0001>

<llo_original>
// kernel: tpu_custom_call.1
$region0: #{tpu_custom_call.1}
  #allocation0 [shape = 'u32[]', space=smem, size = 0x4, offset = 0x4, fixed_abs, tag = 'smem constant byte address 0x4 - core index']
  #allocation1 [shape = 'u32[144,128]{1,0:T(1,128)}', space=vmem, size = 0x12000, scoped, tag = 'internal scratch']
  %s0 = inlined_call_operand.hbm [shape: f32[2,32,128], index: 0, kind: input, shape index: {}]
  %s1 = inlined_call_operand.vmem [shape: f32[2,4,32,8], index: 1, kind: output, shape index: {}]
  %s2 = sld [smem:[#allocation0]]
  $region41: #{tpu_custom_call.1} parent=0
    _
  %s4 = ssub.s32 1, %s2
  %s5 = scalar_select 0, %s4, %s2
  $region1: #{tpu_custom_call.1} parent=0
    #allocation2 [shape = 'u8[32768]{0}', space=vmem, size = 0x8000, scoped, tag = 'input window, operand 0']
    #allocation3 [shape = 's32[2]{0}', space=sflag, size = 0x8, scoped, tag = 'scoped memory for tpu_custom_call.1']
    %6 = vsyncpa [#allocation3], 0
    %s7 = scalar_lea.sflag [#allocation3], 1
    %8 = vsyncpa %s7, 0
    loop: start=0, step=1, limit=4
    $region2: #{tpu_custom_call.1} parent=1 // loop_pre_header
      _
    $region3: #{tpu_custom_call.1} parent=1 // loop_header
      %s10 = sphi 0, %s14
      %p11 = scmp.ge.s32.totalorder %s10, 4
      %s20 = sphi 0, %s22
      %s23 = sphi 0, %s20
      %s24 = sphi 0, %s23
      %s40 = sphi 0, %s24
      %s46 = sphi 0, %s48
      %s49 = sphi 0, %s46
      %s50 = sphi 0, %s49
      %s66 = sphi 0, %s50
    $region4: #{tpu_custom_call.1} parent=1 // loop_header_branch
      %13 = sbr.rel (%p11) target = $region8
    $region5: #{tpu_custom_call.1} parent=1 // loop_body
      %s15 = ssub.s32 %s10, 1
      %s16 = ssub.s32 %s10, 2
      %s17 = sadd.s32 %s10, 1
      %s18 = ssub.s32 %s10, %s17
      %p19 = scmp.eq.s32.totalorder %s18, 0
      %s21 = sadd.s32 %s20, 1
      %s22 = scalar_select %p19, %s20, %s21
      %p25 = pneg %p19
      %p26 = scmp.eq.s32.totalorder %s10, 1
      %p27 = por %p25, %p26
      %p28 = scmp.ne.s32.totalorder %s20, %s23
      %p29 = scmp.eq.s32.totalorder %s10, 0
      %p30 = por %p28, %p29
      %p31 = scmp.ne.s32.totalorder %s20, %s23
      %p32 = scmp.eq.s32.totalorder %s15, 1
      %p33 = por %p31, %p32
      %p34 = scmp.ne.s32.totalorder %s23, %s24
      %p35 = scmp.eq.s32.totalorder %s15, 0
      %p36 = por %p34, %p35
      %p37 = scmp.ne.s32.totalorder %s23, %s24
      %p38 = scmp.eq.s32.totalorder %s16, 1
      %p39 = por %p37, %p38
      %p41 = scmp.ne.s32.totalorder %s24, %s40
      %p42 = scmp.eq.s32.totalorder %s16, 0
      %p43 = por %p41, %p42
      %s44 = ssub.s32 %s10, %s17
      %p45 = scmp.eq.s32.totalorder %s44, 0
      %s47 = sadd.s32 %s46, 1
      %s48 = scalar_select %p45, %s46, %s47
      %p51 = pneg %p45
      %p52 = scmp.eq.s32.totalorder %s10, 1
      %p53 = por %p51, %p52
      %p54 = scmp.ne.s32.totalorder %s46, %s49
      %p55 = scmp.eq.s32.totalorder %s10, 0
      %p56 = por %p54, %p55
      %p57 = scmp.ne.s32.totalorder %s46, %s49
      %p58 = scmp.eq.s32.totalorder %s15, 1
      %p59 = por %p57, %p58
      %p60 = scmp.ne.s32.totalorder %s49, %s50
      %p61 = scmp.eq.s32.totalorder %s15, 0
      %p62 = por %p60, %p61
      %p63 = scmp.ne.s32.totalorder %s49, %s50
      %p64 = scmp.eq.s32.totalorder %s16, 1
      %p65 = por %p63, %p64
      %p67 = scmp.ne.s32.totalorder %s50, %s66
      %p68 = scmp.eq.s32.totalorder %s16, 0
      %p69 = por %p67, %p68
      %p70 = scmp.le.s32.totalorder 1, %s10
      %p71 = scmp.lt.s32.totalorder %s10, 3
      %p72 = pnand %p70, %p71
      %p73 = pneg %p72
      // Predicated region
      $region9: #{tpu_custom_call.1} parent=5 // pred_check
        _
      $region10: #{tpu_custom_call.1} parent=5 // pred_check_branch
        %75 = sbr.rel (%p72) target = $region12
      $region11: #{tpu_custom_call.1} parent=5 // pred_region
        %s76 = ssub.s32 %s10, 1
      $region12: #{tpu_custom_call.1} parent=5 // pred_fallthru
        _
      %p77 = scmp.lt.s32.totalorder %s10, 2
      // Predicated region
      $region13: #{tpu_custom_call.1} parent=5 // pred_check
        %p78 = pneg %p77
      $region14: #{tpu_custom_call.1} parent=5 // pred_check_branch
        %80 = sbr.rel (%p78) target = $region16
      $region15: #{tpu_custom_call.1} parent=5 // pred_region
        // Predicated region
        $region17: #{tpu_custom_call.1} parent=15 // pred_check
          %p81 = pneg %p30
        $region18: #{tpu_custom_call.1} parent=15 // pred_check_branch
          %83 = sbr.rel (%p81) target = $region20
        $region19: #{tpu_custom_call.1} parent=15 // pred_region
          %s84 = sand.u32 %s20, 1
          %s85 = scalar_lea.sflag [#allocation3], %s84
          %s86 = sand.u32 %s20, 1
          %s87 = smul.addr %s86, 32
          %s88 = scalar_lea.vmem [#allocation2], %s87
          %s90 = ssub.s32 512, 512
          %91 = vsyncadd %s85, %s90
          %s92 = smul.addr %s10, 4
          %s93 = smul.addr %s92, 128
          %s94 = scalar_lea.hbm %s0, %s93
          %s95 = sshll.u32 %s88, 4
          %s96 = int_to_ptr.vmem [resolvable:$true] %s95
          %101 = dma.hbm_to_vmem [thread:$0]  %s94, 512, %s96, %s85, 128, 128, 8
        $region20: #{tpu_custom_call.1} parent=15 // pred_fallthru
          _
      $region16: #{tpu_custom_call.1} parent=5 // pred_fallthru
        _
      %p102 = scmp.le.s32.totalorder 1, %s10
      %p103 = scmp.lt.s32.totalorder %s10, 3
      %p104 = pnand %p102, %p103
      %p105 = pneg %p104
      // Predicated region
      $region21: #{tpu_custom_call.1} parent=5 // pred_check
        _
      $region22: #{tpu_custom_call.1} parent=5 // pred_check_branch
        %107 = sbr.rel (%p104) target = $region24
      $region23: #{tpu_custom_call.1} parent=5 // pred_region
        %s108 = ssub.s32 %s10, 1
        %s109 = sand.u32 %s23, 1
        %s110 = scalar_lea.sflag [#allocation3], %s109
        %s111 = sand.u32 %s23, 1
        %s112 = smul.addr %s111, 32
        %s113 = scalar_lea.vmem [#allocation2], %s112
        // Predicated region
        $region25: #{tpu_custom_call.1} parent=23 // pred_check
          %p114 = pneg %p36
        $region26: #{tpu_custom_call.1} parent=23 // pred_check_branch
          %116 = sbr.rel (%p114) target = $region28
        $region27: #{tpu_custom_call.1} parent=23 // pred_region
          %117 = dma.done %s110, 512
        $region28: #{tpu_custom_call.1} parent=23 // pred_fallthru
          _
        %s118 = sand.u32 %s23, 1
        %s119 = scalar_lea.sflag [#allocation3], %s118
        %s120 = sand.u32 %s23, 1
        %s121 = smul.addr %s120, 32
        %s122 = scalar_lea.vmem [#allocation2], %s121
        %p123 = pneg %p36
        %p124 = pneg %p33
        %p125 = pneg %p62
        %p126 = pneg %p59
        %p127 = scmp.lt.s32.totalorder %s15, 1
        %s128 = scalar_select %p127, %s15, 1
        %s129 = smul.addr %s128, 16
        %s130 = smul.addr %s129, 8
        %s131 = scalar_lea.vmem %s1, %s130
        %p132 = scmp.lt.s32.totalorder %s15, 1
        %s133 = scalar_select %p132, %s15, 1
        %s134 = smul.addr %s133, 16
        %s135 = smul.addr %s134, 8
        %s136 = scalar_lea.vmem %s1, %s135
        %v137 = vld [vmem:[%s113] sm:$0xff]
        %v138 = vld [vmem:[%s113 + $0x8] sm:$0xff]
        %v139 = vld [vmem:[%s113 + $0x10] sm:$0xff]
        %v140 = vld [vmem:[%s113 + $0x18] sm:$0xff]
        %vm141 = vcmask 64512
        %142 = vst.msk [vmem:[%s136] sm:$0xff] %vm141, %v137
        %143 = vst.msk [vmem:[%s136 + $0x8] sm:$0xff] %vm141, %v138
        %144 = vst.msk [vmem:[%s136 + $0x10] sm:$0xff] %vm141, %v139
        %145 = vst.msk [vmem:[%s136 + $0x18] sm:$0xff] %vm141, %v140
        %v146 = vld [vmem:[%s113] sm:$0xff]
        %v147 = vld [vmem:[%s113 + $0x8] sm:$0xff]
        %v148 = vld [vmem:[%s113 + $0x10] sm:$0xff]
        %v149 = vld [vmem:[%s113 + $0x18] sm:$0xff]
        %154 = vrot.lane.b32.xlu0 %v146, 88
        %v155 = vpop.permute.xlu0 %154
        %156 = vrot.lane.b32.xlu0 %v147, 88
        %v157 = vpop.permute.xlu0 %156
        %158 = vrot.lane.b32.xlu0 %v148, 88
        %v159 = vpop.permute.xlu0 %158
        %160 = vrot.lane.b32.xlu0 %v149, 88
        %v161 = vpop.permute.xlu0 %160
        %s166 = scalar_lea.vmem %s136, 32
        %167 = vst.msk [vmem:[%s166] sm:$0xff] %vm141, %v155
        %168 = vst.msk [vmem:[%s166 + $0x8] sm:$0xff] %vm141, %v157
        %169 = vst.msk [vmem:[%s166 + $0x10] sm:$0xff] %vm141, %v159
        %170 = vst.msk [vmem:[%s166 + $0x18] sm:$0xff] %vm141, %v161
        %v171 = vld [vmem:[%s113] sm:$0xff]
        %v172 = vld [vmem:[%s113 + $0x8] sm:$0xff]
        %v173 = vld [vmem:[%s113 + $0x10] sm:$0xff]
        %v174 = vld [vmem:[%s113 + $0x18] sm:$0xff]
        %179 = vrot.lane.b32.xlu0 %v171, 48
        %v180 = vpop.permute.xlu0 %179
        %181 = vrot.lane.b32.xlu0 %v172, 48
        %v182 = vpop.permute.xlu0 %181
        %183 = vrot.lane.b32.xlu0 %v173, 48
        %v184 = vpop.permute.xlu0 %183
        %185 = vrot.lane.b32.xlu0 %v174, 48
        %v186 = vpop.permute.xlu0 %185
        %s191 = scalar_lea.vmem %s136, 64
        %192 = vst.msk [vmem:[%s191] sm:$0xff] %vm141, %v180
        %193 = vst.msk [vmem:[%s191 + $0x8] sm:$0xff] %vm141, %v182
        %194 = vst.msk [vmem:[%s191 + $0x10] sm:$0xff] %vm141, %v184
        %195 = vst.msk [vmem:[%s191 + $0x18] sm:$0xff] %vm141, %v186
        %v196 = vld [vmem:[%s113] sm:$0xff]
        %v197 = vld [vmem:[%s113 + $0x8] sm:$0xff]
        %v198 = vld [vmem:[%s113 + $0x10] sm:$0xff]
        %v199 = vld [vmem:[%s113 + $0x18] sm:$0xff]
        %204 = vrot.lane.b32.xlu0 %v196, 8
        %v205 = vpop.permute.xlu0 %204
        %206 = vrot.lane.b32.xlu0 %v197, 8
        %v207 = vpop.permute.xlu0 %206
        %208 = vrot.lane.b32.xlu0 %v198, 8
        %v209 = vpop.permute.xlu0 %208
        %210 = vrot.lane.b32.xlu0 %v199, 8
        %v211 = vpop.permute.xlu0 %210
        %s216 = scalar_lea.vmem %s136, 96
        %217 = vst.msk [vmem:[%s216] sm:$0xff] %vm141, %v205
        %218 = vst.msk [vmem:[%s216 + $0x8] sm:$0xff] %vm141, %v207
        %219 = vst.msk [vmem:[%s216 + $0x10] sm:$0xff] %vm141, %v209
        %220 = vst.msk [vmem:[%s216 + $0x18] sm:$0xff] %vm141, %v211
        %p221 = scmp.lt.s32.totalorder %s15, 1
        %s222 = scalar_select %p221, %s15, 1
        %s223 = smul.addr %s222, 16
        %s224 = smul.addr %s223, 8
        %s225 = scalar_lea.vmem %s1, %s224
        // Predicated region
        $region29: #{tpu_custom_call.1} parent=23 // pred_check
          %p226 = pneg %p59
        $region30: #{tpu_custom_call.1} parent=23 // pred_check_branch
          %228 = sbr.rel (%p226) target = $region32
        $region31: #{tpu_custom_call.1} parent=23 // pred_region
          _
        $region32: #{tpu_custom_call.1} parent=23 // pred_fallthru
          _
      $region24: #{tpu_custom_call.1} parent=5 // pred_fallthru
        _
      %p229 = scmp.le.s32.totalorder 2, %s10
      // Predicated region
      $region33: #{tpu_custom_call.1} parent=5 // pred_check
        %p230 = pneg %p229
      $region34: #{tpu_custom_call.1} parent=5 // pred_check_branch
        %232 = sbr.rel (%p230) target = $region36
      $region35: #{tpu_custom_call.1} parent=5 // pred_region
        %s233 = ssub.s32 %s10, 2
        // Predicated region
        $region37: #{tpu_custom_call.1} parent=35 // pred_check
          %p234 = pneg %p65
        $region38: #{tpu_custom_call.1} parent=35 // pred_check_branch
          %236 = sbr.rel (%p234) target = $region40
        $region39: #{tpu_custom_call.1} parent=35 // pred_region
          %p237 = scmp.lt.s32.totalorder %s16, 1
          %s238 = scalar_select %p237, %s16, 1
          %s239 = smul.addr %s238, 16
          %s240 = smul.addr %s239, 8
          %s241 = scalar_lea.vmem %s1, %s240
        $region40: #{tpu_custom_call.1} parent=35 // pred_fallthru
          _
      $region36: #{tpu_custom_call.1} parent=5 // pred_fallthru
        _
    $region6: #{tpu_custom_call.1} parent=1 // loop_footer
      %s14 = sadd.s32 1, %s10
    $region7: #{tpu_custom_call.1} parent=1 // loop_footer_branch
      %9 = sbr.rel target = $region3
    $region8: #{tpu_custom_call.1} parent=1 // loop_exit
      _
    %242 = vsyncpa [#allocation3], 1
    %s243 = scalar_lea.sflag [#allocation3], 1
    %244 = vsyncpa %s243, 1

</llo_original>
